<compile_context>
chip_gen: v7x
topology: tpu7x:2x2x1
jax: 0.10.0
libtpu: 0.0.40
codegen_flags: <defaults>
</compile_context>

<pallas_src>
import jax
import jax.numpy as jnp
from jax.experimental import pallas as pl
from jax.experimental.pallas import tpu as pltpu


_LANE = 128
_HID1 = 32
_HID2 = 16
_VMEM_BUDGET_BYTES = 48 * 1024 * 1024   # <= v7x 64 MiB physical; >= all scoped defaults


def _round_up(n, m):
    return ((n + m - 1) // m) * m


def _cdiv(a, b):
    return (a + b - 1) // b


def _mlp_kernel(x_ref, w1_ref, b1_ref, w2_ref, b2_ref, w3_ref, b3_ref, o_ref):
    # x_ref: (TILE_B, IN) block of the batch (f32 or bf16 in HBM).
    x = x_ref[...]
    if x.dtype != jnp.bfloat16:
        x = x.astype(jnp.bfloat16)

    # Layer 1 on the MXU in bf16, f32 accumulation: (TILE_B, IN) @ (IN, 32).
    h1 = jnp.dot(x, w1_ref[...], preferred_element_type=jnp.float32) + b1_ref[...]
    h1 = jnp.maximum(h1, 0.0)

    # Dropout(0.2): identity in eval mode.
    # TODO(synk): training-mode dropout mask not implemented.

    # Move the batch onto lanes once (bf16 -> half the transpose bytes); everything
    # downstream, including the output store, is lane-dense with width TILE_B.
    h1t = h1.astype(jnp.bfloat16).T                                 # (32, TILE_B)

    # Layer 2 on the MXU; the big operand stays as packed RHS: (16,32) @ (32,TILE_B).
    h2 = jnp.dot(w2_ref[...], h1t, preferred_element_type=jnp.float32) + b2_ref[...]
    h2 = jnp.maximum(h2, 0.0)

    # Layer 3 (out_features = 1): VPU multiply + XLU sublane reduce -> (1, TILE_B).
    out = jnp.sum(h2 * w3_ref[...], axis=0, keepdims=True) + b3_ref[...]
    o_ref[...] = out.astype(o_ref.dtype)


def _vmem_bytes_per_batch_row(x_itemsize, in_features):
    """Rough per-batch-row VMEM footprint of one grid step (lane/sublane padded)."""
    in_pad = _round_up(in_features, _LANE)
    h1_pad = _round_up(_HID1, _LANE)
    return (2 * in_pad * x_itemsize      # streamed x tile, double-buffered, lane-padded
            + h1_pad * (4 + 2)           # h1 f32 + bf16 copy (lane-padded to 128)
            + _HID1 * 2 + _HID2 * 4      # h1t (bf16) + h2 (f32), batch-on-lanes (dense)
            + 2 * 8 * 4)                 # (1, TILE_B) f32 output, double-buffered, sublane-padded


def like_predictor_forward(x, params, *, tile_b=16384):
    """x: [B, input_size] float32 or bfloat16 -> [B, 1] float32."""
    w1, b1, w2, b2, w3, b3 = params
    B, in_features = x.shape

    # ---- batch tile selection ------------------------------------------------
    b_ceil = _round_up(B, _LANE)
    tile_b = max(_LANE, min(_round_up(tile_b, _LANE), b_ceil))
    # v7x megacore: keep >= 2 grid steps so the "parallel" axis shards across both
    # TensorCores (no-op on single-TC v5e/v6e; one extra ~0.35us step there).
    if b_ceil >= 2 * _LANE:
        tile_b = min(tile_b, _round_up(_cdiv(b_ceil, 2), _LANE))
    # VMEM budget (explicit, generation-safe).
    per_row = _vmem_bytes_per_batch_row(x.dtype.itemsize, in_features)
    fixed = 2 * 1024 * 1024              # weights/biases + compiler scratch headroom
    max_rows = max(
        _LANE,
        ((_VMEM_BUDGET_BYTES - fixed) // int(per_row * 1.3)) // _LANE * _LANE)
    tile_b = min(tile_b, max_rows)

    # ---- grid / (minimal) padding ---------------------------------------------
    if B < tile_b:
        # Tiny batches only: pad up to a single tile (cheap copy).  Large batches
        # never pad: the final partial tile reads out-of-bounds rows (unspecified
        # values) which are sliced off below and never enter a cross-row reduction.
        x = jnp.pad(x, ((0, tile_b - B), (0, 0)))
        num_tiles = 1
    else:
        num_tiles = _cdiv(B, tile_b)
    rows_total = num_tiles * tile_b

    # bf16 MXU operands (f32 accumulation); biases and the tiny final layer stay f32.
    w1b = w1.astype(jnp.bfloat16)
    w2b = w2.astype(jnp.bfloat16)

    flops = 2 * rows_total * (in_features * _HID1 + _HID1 * _HID2 + _HID2)
    param_bytes = (w1b.size * 2 + w2b.size * 2
                   + sum(int(p.size) * p.dtype.itemsize for p in (b1, b2, w3, b3)))
    bytes_accessed = int(rows_total * in_features * x.dtype.itemsize
                         + rows_total * 4 + param_bytes)

    vmem_limit = int(min(_VMEM_BUDGET_BYTES,
                         max(32 * 1024 * 1024, fixed + per_row * tile_b * 1.3)))

    def const_spec(shape):
        # Constant index_map -> fetched once, resident in VMEM across all grid steps.
        return pl.BlockSpec(shape, lambda i: (0, 0))

    out = pl.pallas_call(
        _mlp_kernel,
        out_shape=jax.ShapeDtypeStruct((num_tiles, 1, tile_b), jnp.float32),
        grid=(num_tiles,),
        in_specs=[
            # Streamed (double-buffered) batch tiles.
            pl.BlockSpec((tile_b, in_features), lambda i: (i, 0)),
            const_spec(w1b.shape), const_spec(b1.shape),
            const_spec(w2b.shape), const_spec(b2.shape),
            const_spec(w3.shape), const_spec(b3.shape),
        ],
        # Lane-dense output block; leading tile dim squeezed -> kernel sees (1, tile_b).
        out_specs=pl.BlockSpec((None, 1, tile_b), lambda i: (i, 0, 0)),
        compiler_params=pltpu.CompilerParams(
            dimension_semantics=("parallel",),
            vmem_limit_bytes=vmem_limit),
        cost_estimate=pl.CostEstimate(
            flops=flops, transcendentals=0, bytes_accessed=bytes_accessed),
    )(x, w1b, b1, w2b, b2, w3, b3)

    return out.reshape(-1)[:B].reshape(B, 1)


def init_params(key, input_size):
    """Deterministic init matching the shapes of LikePredictor.__init__.

    Layouts chosen for the kernel:
      w1: (input_size, 32)  == torch W1.T     b1: (1, 32)
      w2: (16, 32)          == torch W2       b2: (16, 1)  (column)
      w3: (16, 1)           == torch W3.T     b3: (1, 1)
    """
    k1, k2, k3, k4, k5, k6 = jax.random.split(key, 6)
    w1 = jax.random.normal(k1, (input_size, 32), jnp.float32) * 0.1
    b1 = jax.random.normal(k2, (1, 32), jnp.float32) * 0.01
    w2 = jax.random.normal(k3, (16, 32), jnp.float32) * 0.1
    b2 = jax.random.normal(k4, (16, 1), jnp.float32) * 0.01
    w3 = jax.random.normal(k5, (16, 1), jnp.float32) * 0.1
    b3 = jax.random.normal(k6, (1, 1), jnp.float32) * 0.01
    return (w1, b1, w2, b2, w3, b3)


def reference_forward(x, params):
    """Plain-JAX f32 reference (eval-mode dropout = identity)."""
    w1, b1, w2, b2, w3, b3 = params
    h1 = jnp.maximum(x @ w1 + b1, 0.0)
    h2 = jnp.maximum(h1 @ w2.T + b2.T, 0.0)
    return h2 @ w3 + b3


if __name__ == "__main__":
    key = jax.random.PRNGKey(0)
    kx, kp, kx2 = jax.random.split(key, 3)

    input_size = 32
    params = init_params(kp, input_size)

    # 1) Small batch, f32 input (single padded tile). bf16 MXU => ~1e-3 abs error.
    x = jax.random.normal(kx, (8, input_size), jnp.float32)
    ref = reference_forward(x, params)
    out = jax.block_until_ready(like_predictor_forward(x, params))
    assert out.shape == (8, 1), out.shape
    assert jnp.allclose(out, ref, atol=2e-2, rtol=2e-2), "f32-input path mismatch"

    # 2) bf16-streamed input (halves the HBM x read), f32 accumulation.
    out_bf16 = jax.block_until_ready(
        like_predictor_forward(x.astype(jnp.bfloat16), params))
    assert out_bf16.shape == (8, 1), out_bf16.shape
    assert jnp.allclose(out_bf16, ref, atol=5e-2, rtol=5e-2), "bf16-input path mismatch"

    # 3) Multi-tile grid with a partial (out-of-bounds-read) last tile.
    x2 = jax.random.normal(kx2, (300, input_size), jnp.float32)
    ref2 = reference_forward(x2, params)
    out2 = jax.block_until_ready(like_predictor_forward(x2, params, tile_b=128))
    assert out2.shape == (300, 1), out2.shape
    assert jnp.allclose(out2, ref2, atol=2e-2, rtol=2e-2), "multi-tile path mismatch"

    print("KERNEL_OK")
</pallas_src>

<mosaic_0001>
module attributes {stable_mosaic.version = 11 : i64} {
  func.func @_mlp_kernel(%arg0: i32, %arg1: memref<128x32xf32, #tpu.memory_space<vmem>>, %arg2: memref<32x32xbf16, #tpu.memory_space<vmem>>, %arg3: memref<1x32xf32, #tpu.memory_space<vmem>>, %arg4: memref<16x32xbf16, #tpu.memory_space<vmem>>, %arg5: memref<16x1xf32, #tpu.memory_space<vmem>>, %arg6: memref<16x1xf32, #tpu.memory_space<vmem>>, %arg7: memref<1x1xf32, #tpu.memory_space<vmem>>, %arg8: memref<1x1x128xf32, #tpu.memory_space<vmem>>) attributes {dimension_semantics = [#tpu.dimension_semantics<parallel>], iteration_bounds = array<i64: 1>, scalar_prefetch = 0 : i64, scratch_operands = 0 : i64, tpu.core_type = #tpu.core_type<tc>, window_params = [{transform_indices = @transform_0, window_bounds = array<i64: 128, 32>}, {pipeline_mode = #tpu.pipeline_mode<synchronous>, transform_indices = @transform_1, window_bounds = array<i64: 32, 32>}, {pipeline_mode = #tpu.pipeline_mode<synchronous>, transform_indices = @transform_2, window_bounds = array<i64: 1, 32>}, {pipeline_mode = #tpu.pipeline_mode<synchronous>, transform_indices = @transform_3, window_bounds = array<i64: 16, 32>}, {pipeline_mode = #tpu.pipeline_mode<synchronous>, transform_indices = @transform_4, window_bounds = array<i64: 16, 1>}, {pipeline_mode = #tpu.pipeline_mode<synchronous>, transform_indices = @transform_5, window_bounds = array<i64: 16, 1>}, {pipeline_mode = #tpu.pipeline_mode<synchronous>, transform_indices = @transform_6, window_bounds = array<i64: 1, 1>}, {transform_indices = @transform_7, window_bounds = array<i64: 1, 1, 128>}]} {
    %c0 = arith.constant 0 : index
    %c0_0 = arith.constant 0 : index
    %0 = vector.load %arg1[%c0, %c0_0] : memref<128x32xf32, #tpu.memory_space<vmem>>, vector<128x32xf32>
    %1 = arith.truncf %0 : vector<128x32xf32> to vector<128x32xbf16>
    %c0_1 = arith.constant 0 : index
    %c0_2 = arith.constant 0 : index
    %2 = vector.load %arg2[%c0_1, %c0_2] : memref<32x32xbf16, #tpu.memory_space<vmem>>, vector<32x32xbf16>
    %cst = arith.constant dense<0.000000e+00> : vector<128x32xf32>
    %3 = tpu.matmul %1, %2, %cst {dimension_numbers = #tpu.dot_dimension_numbers<[1], [0], [0], [1], [0, 0, 1, 1], [], []>} : vector<128x32xbf16>, vector<32x32xbf16>, vector<128x32xf32> -> vector<128x32xf32>
    %c0_3 = arith.constant 0 : index
    %c0_4 = arith.constant 0 : index
    %4 = vector.load %arg3[%c0_3, %c0_4] : memref<1x32xf32, #tpu.memory_space<vmem>>, vector<1x32xf32>
    %5 = vector.broadcast %4 : vector<1x32xf32> to vector<128x32xf32>
    %6 = arith.addf %3, %5 : vector<128x32xf32>
    %cst_5 = arith.constant 0.000000e+00 : f32
    %7 = vector.broadcast %cst_5 : f32 to vector<128x32xf32>
    %8 = arith.maximumf %6, %7 : vector<128x32xf32>
    %9 = arith.truncf %8 : vector<128x32xf32> to vector<128x32xbf16>
    %10 = tpu.transpose %9, [1, 0] : vector<128x32xbf16> -> vector<32x128xbf16>
    %c0_6 = arith.constant 0 : index
    %c0_7 = arith.constant 0 : index
    %11 = vector.load %arg4[%c0_6, %c0_7] : memref<16x32xbf16, #tpu.memory_space<vmem>>, vector<16x32xbf16>
    %cst_8 = arith.constant dense<0.000000e+00> : vector<16x128xf32>
    %12 = tpu.matmul %11, %10, %cst_8 {dimension_numbers = #tpu.dot_dimension_numbers<[1], [0], [0], [1], [0, 0, 1, 1], [], []>} : vector<16x32xbf16>, vector<32x128xbf16>, vector<16x128xf32> -> vector<16x128xf32>
    %c0_9 = arith.constant 0 : index
    %c0_10 = arith.constant 0 : index
    %13 = vector.load %arg5[%c0_9, %c0_10] : memref<16x1xf32, #tpu.memory_space<vmem>>, vector<16x1xf32>
    %14 = vector.broadcast %13 : vector<16x1xf32> to vector<16x128xf32>
    %15 = arith.addf %12, %14 : vector<16x128xf32>
    %cst_11 = arith.constant 0.000000e+00 : f32
    %16 = vector.broadcast %cst_11 : f32 to vector<16x128xf32>
    %17 = arith.maximumf %15, %16 : vector<16x128xf32>
    %c0_12 = arith.constant 0 : index
    %c0_13 = arith.constant 0 : index
    %18 = vector.load %arg6[%c0_12, %c0_13] : memref<16x1xf32, #tpu.memory_space<vmem>>, vector<16x1xf32>
    %19 = vector.broadcast %18 : vector<16x1xf32> to vector<16x128xf32>
    %20 = arith.mulf %17, %19 : vector<16x128xf32>
    %cst_14 = arith.constant dense<0.000000e+00> : vector<128xf32>
    %21 = vector.multi_reduction <add>, %20, %cst_14 [0] : vector<16x128xf32> to vector<128xf32>
    %22 = vector.shape_cast %21 : vector<128xf32> to vector<1x128xf32>
    %c0_15 = arith.constant 0 : index
    %c0_16 = arith.constant 0 : index
    %23 = vector.load %arg7[%c0_15, %c0_16] : memref<1x1xf32, #tpu.memory_space<vmem>>, vector<1x1xf32>
    %24 = vector.broadcast %23 : vector<1x1xf32> to vector<1x128xf32>
    %25 = arith.addf %22, %24 : vector<1x128xf32>
    %c0_17 = arith.constant 0 : index
    %c0_18 = arith.constant 0 : index
    %c0_19 = arith.constant 0 : index
    %26 = vector.load %arg8[%c0_17, %c0_18, %c0_19] : memref<1x1x128xf32, #tpu.memory_space<vmem>>, vector<1x1x128xf32>
    %27 = vector.shape_cast %26 : vector<1x1x128xf32> to vector<1x128xf32>
    %28 = vector.shape_cast %25 : vector<1x128xf32> to vector<1x1x128xf32>
    tpu.vector_store %arg8[%c0_17, %c0_18, %c0_19], %28 {strides = array<i32>} : memref<1x1x128xf32, #tpu.memory_space<vmem>>, vector<1x1x128xf32>,
    return
  }
  func.func @transform_0(%arg0: i32) -> (i32, i32) {
    %c0_i32 = arith.constant 0 : i32
    %c0_i32_0 = arith.constant 0 : i32
    return %arg0, %c0_i32 : i32, i32
  }
  func.func @transform_1(%arg0: i32) -> (i32, i32) {
    %c0_i32 = arith.constant 0 : i32
    %c0_i32_0 = arith.constant 0 : i32
    %c0_i32_1 = arith.constant 0 : i32
    return %c0_i32, %c0_i32_0 : i32, i32
  }
  func.func @transform_2(%arg0: i32) -> (i32, i32) {
    %c0_i32 = arith.constant 0 : i32
    %c0_i32_0 = arith.constant 0 : i32
    %c0_i32_1 = arith.constant 0 : i32
    return %c0_i32, %c0_i32_0 : i32, i32
  }
  func.func @transform_3(%arg0: i32) -> (i32, i32) {
    %c0_i32 = arith.constant 0 : i32
    %c0_i32_0 = arith.constant 0 : i32
    %c0_i32_1 = arith.constant 0 : i32
    return %c0_i32, %c0_i32_0 : i32, i32
  }
  func.func @transform_4(%arg0: i32) -> (i32, i32) {
    %c0_i32 = arith.constant 0 : i32
    %c0_i32_0 = arith.constant 0 : i32
    %c0_i32_1 = arith.constant 0 : i32
    return %c0_i32, %c0_i32_0 : i32, i32
  }
  func.func @transform_5(%arg0: i32) -> (i32, i32) {
    %c0_i32 = arith.constant 0 : i32
    %c0_i32_0 = arith.constant 0 : i32
    %c0_i32_1 = arith.constant 0 : i32
    return %c0_i32, %c0_i32_0 : i32, i32
  }
  func.func @transform_6(%arg0: i32) -> (i32, i32) {
    %c0_i32 = arith.constant 0 : i32
    %c0_i32_0 = arith.constant 0 : i32
    %c0_i32_1 = arith.constant 0 : i32
    return %c0_i32, %c0_i32_0 : i32, i32
  }
  func.func @transform_7(%arg0: i32) -> (i32, i32, i32) {
    %c0_i32 = arith.constant 0 : i32
    %c0_i32_0 = arith.constant 0 : i32
    %c0_i32_1 = arith.constant 0 : i32
    return %arg0, %c0_i32, %c0_i32_0 : i32, i32, i32
  }
}

</mosaic_0001>

<llo_original>
// kernel: tpu_custom_call.1
$region0: #{tpu_custom_call.1}
  #allocation0 [shape = 'u32[]', space=smem, size = 0x4, offset = 0x4, fixed_abs, tag = 'smem constant byte address 0x4 - core index']
  #allocation1 [shape = 'u32[144,128]{1,0:T(1,128)}', space=vmem, size = 0x12000, scoped, tag = 'internal scratch']
  #allocation2 [shape = 'f32[1,1]{1,0:T(1,128)S(1)}', space=vmem, size = 0x200, scoped, tag = 'scoped memory for tpu_custom_call.1']
  %s0 = inlined_call_operand.vmem [shape: f32[128,32], index: 0, kind: input, shape index: {}]
  %s1 = inlined_call_operand.vmem [shape: bf16[32,32], index: 1, kind: input, shape index: {}]
  %s2 = inlined_call_operand.vmem [shape: f32[1,32], index: 2, kind: input, shape index: {}]
  %s3 = inlined_call_operand.vmem [shape: bf16[16,32], index: 3, kind: input, shape index: {}]
  %s4 = inlined_call_operand.vmem [shape: f32[16,1], index: 4, kind: input, shape index: {}]
  %s5 = inlined_call_operand.vmem [shape: f32[16,1], index: 5, kind: input, shape index: {}]
  %s6 = inlined_call_operand.<no memory space> [shape: f32[1,1], index: 6, kind: input, shape index: {}]
  %s7 = inlined_call_operand.hbm [shape: f32[1,1,128], index: 7, kind: output, shape index: {}]
  %s8 = sld [smem:[#allocation0]]
  $region38: #{tpu_custom_call.1} parent=0
    _
  %s10 = ssub.s32 1, %s8
  %s11 = scalar_select 0, %s10, %s8
  %v12 = vstv %s6
  %13 = vst [vmem:[#allocation2] sm:$0x1] %v12
  $region1: #{tpu_custom_call.1} parent=0
    #allocation3 [shape = 'u8[512]{0}', space=vmem, size = 0x400, scoped, tag = 'output window, operand 0, single buffered']
    #allocation4 [shape = 's32[1]{0}', space=sflag, size = 0x4, scoped, tag = 'scoped memory for tpu_custom_call.1']
    %14 = vsyncpa [#allocation4], 0
    // Predicated region
    $region2: #{tpu_custom_call.1} parent=1 // pred_check
      _
    $region3: #{tpu_custom_call.1} parent=1 // pred_check_branch
      %16 = sbr.rel (0) target = $region5
    $region4: #{tpu_custom_call.1} parent=1 // pred_region
      _
    $region5: #{tpu_custom_call.1} parent=1 // pred_fallthru
      _
    // Predicated region
    $region6: #{tpu_custom_call.1} parent=1 // pred_check
      _
    $region7: #{tpu_custom_call.1} parent=1 // pred_check_branch
      %18 = sbr.rel (0) target = $region9
    $region8: #{tpu_custom_call.1} parent=1 // pred_region
      _
    $region9: #{tpu_custom_call.1} parent=1 // pred_fallthru
      _
    // Predicated region
    $region10: #{tpu_custom_call.1} parent=1 // pred_check
      _
    $region11: #{tpu_custom_call.1} parent=1 // pred_check_branch
      %20 = sbr.rel (0) target = $region13
    $region12: #{tpu_custom_call.1} parent=1 // pred_region
      _
    $region13: #{tpu_custom_call.1} parent=1 // pred_fallthru
      _
    // Predicated region
    $region14: #{tpu_custom_call.1} parent=1 // pred_check
      _
    $region15: #{tpu_custom_call.1} parent=1 // pred_check_branch
      %22 = sbr.rel (0) target = $region17
    $region16: #{tpu_custom_call.1} parent=1 // pred_region
      _
    $region17: #{tpu_custom_call.1} parent=1 // pred_fallthru
      _
    // Predicated region
    $region18: #{tpu_custom_call.1} parent=1 // pred_check
      _
    $region19: #{tpu_custom_call.1} parent=1 // pred_check_branch
      %24 = sbr.rel (0) target = $region21
    $region20: #{tpu_custom_call.1} parent=1 // pred_region
      _
    $region21: #{tpu_custom_call.1} parent=1 // pred_fallthru
      _
    // Predicated region
    $region22: #{tpu_custom_call.1} parent=1 // pred_check
      _
    $region23: #{tpu_custom_call.1} parent=1 // pred_check_branch
      %26 = sbr.rel (0) target = $region25
    $region24: #{tpu_custom_call.1} parent=1 // pred_region
      _
    $region25: #{tpu_custom_call.1} parent=1 // pred_fallthru
      _
    // Predicated region
    $region26: #{tpu_custom_call.1} parent=1 // pred_check
      _
    $region27: #{tpu_custom_call.1} parent=1 // pred_check_branch
      %28 = sbr.rel (0) target = $region29
    $region28: #{tpu_custom_call.1} parent=1 // pred_region
      _
    $region29: #{tpu_custom_call.1} parent=1 // pred_fallthru
      _
    %v30 = vld [vmem:[%s0] sm:$0xff]
    %v31 = vld [vmem:[%s0 + $0x8] sm:$0xff]
    %v32 = vld [vmem:[%s0 + $0x10] sm:$0xff]
    %v33 = vld [vmem:[%s0 + $0x18] sm:$0xff]
    %v34 = vld [vmem:[%s0 + $0x20] sm:$0xff]
    %v35 = vld [vmem:[%s0 + $0x28] sm:$0xff]
    %v36 = vld [vmem:[%s0 + $0x30] sm:$0xff]
    %v37 = vld [vmem:[%s0 + $0x38] sm:$0xff]
    %v38 = vld [vmem:[%s0 + $0x40] sm:$0xff]
    %v39 = vld [vmem:[%s0 + $0x48] sm:$0xff]
    %v40 = vld [vmem:[%s0 + $0x50] sm:$0xff]
    %v41 = vld [vmem:[%s0 + $0x58] sm:$0xff]
    %v42 = vld [vmem:[%s0 + $0x60] sm:$0xff]
    %v43 = vld [vmem:[%s0 + $0x68] sm:$0xff]
    %v44 = vld [vmem:[%s0 + $0x70] sm:$0xff]
    %v45 = vld [vmem:[%s0 + $0x78] sm:$0xff]
    %v46 = vpack.c.bf16 %v31, %v30
    %v47 = vpack.c.bf16 %v33, %v32
    %v48 = vpack.c.bf16 %v35, %v34
    %v49 = vpack.c.bf16 %v37, %v36
    %v50 = vpack.c.bf16 %v39, %v38
    %v51 = vpack.c.bf16 %v41, %v40
    %v52 = vpack.c.bf16 %v43, %v42
    %v53 = vpack.c.bf16 %v45, %v44
    %v54 = vld [vmem:[%s1] sm:$0xf]
    %v55 = vld [vmem:[%s1 + $0x4] sm:$0xf]
    %v56 = vld [vmem:[%s1 + $0x8] sm:$0xf]
    %v57 = vld [vmem:[%s1 + $0xc] sm:$0xf]
    %v58 = vld [vmem:[%s2] sm:$0x1]
    %v60 = vlaneseq
    %v61 = vshrl.u32 %v60, 7
    %v62 = vsub.s32 0, %v61
    %v63 = vrot.slane %v58, %v62
    %v69 = vunpack.c.l.b16 %v54
    %v70 = vunpack.c.l.b16 %v55
    %v71 = vunpack.c.l.b16 %v56
    %v72 = vunpack.c.l.b16 %v57
    %v73 = vpack.c.b16 %v70, %v69
    %v74 = vpack.c.b16 %v72, %v71
    %vm77 = vcmask 261120
    %v79 = vsel %vm77, %v46, 0
    %v82 = vsel %vm77, %v47, 0
    %v85 = vsel %vm77, %v48, 0
    %v88 = vsel %vm77, %v49, 0
    %v91 = vsel %vm77, %v50, 0
    %v94 = vsel %vm77, %v51, 0
    %v97 = vsel %vm77, %v52, 0
    %v100 = vsel %vm77, %v53, 0
    %102 = vmatprep.subr.bf16.mxu0 0
    %103 = vmatpush1.bf16.msra.mxu0 %v73
    %104 = vmatprep.subr.bf16.mxu0 0
    %105 = vmatpush1.bf16.msra.mxu0 %v74
    %106 = vmatprep.subr.bf16.mxu0 0
    %107 = vmatpush1.bf16.msra.mxu0 0
    %108 = vmatprep.subr.bf16.mxu0 0
    %109 = vmatpush1.bf16.msra.mxu0 0
    %110 = vmatprep.subr.bf16.mxu0 0
    %111 = vmatpush1.bf16.msra.mxu0 0
    %112 = vmatprep.subr.bf16.mxu0 0
    %113 = vmatpush1.bf16.msra.mxu0 0
    %114 = vmatprep.subr.bf16.mxu0 0
    %115 = vmatpush1.bf16.msra.mxu0 0
    %116 = vmatprep.subr.bf16.mxu0 0
    %117 = vmatpush1.bf16.msra.mxu0 0
    %118 = vmatprep.subr.bf16.mxu0 0
    %119 = vmatpush1.bf16.msra.mxu0 0
    %120 = vmatprep.subr.bf16.mxu0 0
    %121 = vmatpush1.bf16.msra.mxu0 0
    %122 = vmatprep.subr.bf16.mxu0 0
    %123 = vmatpush1.bf16.msra.mxu0 0
    %124 = vmatprep.subr.bf16.mxu0 0
    %125 = vmatpush1.bf16.msra.mxu0 0
    %126 = vmatprep.subr.bf16.mxu0 0
    %127 = vmatpush1.bf16.msra.mxu0 0
    %128 = vmatprep.subr.bf16.mxu0 0
    %129 = vmatpush1.bf16.msra.mxu0 0
    %130 = vmatprep.subr.bf16.mxu0 0
    %131 = vmatpush1.bf16.msra.mxu0 0
    %132 = vmatprep.subr.bf16.mxu0 0
    %133 = vmatpush1.bf16.msra.mxu0 0
    %134 = vmatprep.mubr.bf16.mxu0 0
    %135 = vmatmul.mubr.bf16.gmra.mrb[0].mxu0 %v79
    %v136 = vpop.f32.mrb[0].mxu0
    %v137 = vadd.f32 %v63, %v136
    %v138 = vpop.f32.mrb[0].mxu0
    %v139 = vpop.f32.mrb[0].mxu0
    %v140 = vadd.f32 %v63, %v139
    %v141 = vpop.f32.mrb[0].mxu0
    %142 = vmatprep.mubr.bf16.mxu0 0
    %143 = vmatmul.mubr.bf16.gmra.mrb[0].mxu0 %v82
    %v144 = vpop.f32.mrb[0].mxu0
    %v145 = vadd.f32 %v63, %v144
    %v146 = vpop.f32.mrb[0].mxu0
    %v147 = vpop.f32.mrb[0].mxu0
    %v148 = vadd.f32 %v63, %v147
    %v149 = vpop.f32.mrb[0].mxu0
    %150 = vmatprep.mubr.bf16.mxu0 0
    %151 = vmatmul.mubr.bf16.gmra.mrb[0].mxu0 %v85
    %v152 = vpop.f32.mrb[0].mxu0
    %v153 = vadd.f32 %v63, %v152
    %v154 = vpop.f32.mrb[0].mxu0
    %v155 = vpop.f32.mrb[0].mxu0
    %v156 = vadd.f32 %v63, %v155
    %v157 = vpop.f32.mrb[0].mxu0
    %158 = vmatprep.mubr.bf16.mxu0 0
    %159 = vmatmul.mubr.bf16.gmra.mrb[0].mxu0 %v88
    %v160 = vpop.f32.mrb[0].mxu0
    %v161 = vadd.f32 %v63, %v160
    %v162 = vpop.f32.mrb[0].mxu0
    %v163 = vpop.f32.mrb[0].mxu0
    %v164 = vadd.f32 %v63, %v163
    %v165 = vpop.f32.mrb[0].mxu0
    %166 = vmatprep.mubr.bf16.mxu0 0
    %167 = vmatmul.mubr.bf16.gmra.mrb[0].mxu0 %v91
    %v168 = vpop.f32.mrb[0].mxu0
    %v169 = vadd.f32 %v63, %v168
    %v170 = vpop.f32.mrb[0].mxu0
    %v171 = vpop.f32.mrb[0].mxu0
    %v172 = vadd.f32 %v63, %v171
    %v173 = vpop.f32.mrb[0].mxu0
    %174 = vmatprep.mubr.bf16.mxu0 0
    %175 = vmatmul.mubr.bf16.gmra.mrb[0].mxu0 %v94
    %v176 = vpop.f32.mrb[0].mxu0
    %v177 = vadd.f32 %v63, %v176
    %v178 = vpop.f32.mrb[0].mxu0
    %v179 = vpop.f32.mrb[0].mxu0
    %v180 = vadd.f32 %v63, %v179
    %v181 = vpop.f32.mrb[0].mxu0
    %182 = vmatprep.mubr.bf16.mxu0 0
    %183 = vmatmul.mubr.bf16.gmra.mrb[0].mxu0 %v97
    %v184 = vpop.f32.mrb[0].mxu0
    %v185 = vadd.f32 %v63, %v184
    %v186 = vpop.f32.mrb[0].mxu0
    %v187 = vpop.f32.mrb[0].mxu0
    %v188 = vadd.f32 %v63, %v187
    %v189 = vpop.f32.mrb[0].mxu0
    %190 = vmatprep.mubr.bf16.mxu0 0
    %191 = vmatmul.mubr.bf16.gmra.mrb[0].mxu0 %v100
    %v192 = vpop.f32.mrb[0].mxu0
    %v193 = vadd.f32 %v63, %v192
    %v194 = vpop.f32.mrb[0].mxu0
    %v195 = vpop.f32.mrb[0].mxu0
    %v196 = vadd.f32 %v63, %v195
    %v197 = vpop.f32.mrb[0].mxu0
    %198 = vdwg.mxu0
    %v199 = vmax.f32 %v137, 0.0
    %v200 = vmax.f32 %v140, 0.0
    %v201 = vmax.f32 %v145, 0.0
    %v202 = vmax.f32 %v148, 0.0
    %v203 = vmax.f32 %v153, 0.0
    %v204 = vmax.f32 %v156, 0.0
    %v205 = vmax.f32 %v161, 0.0
    %v206 = vmax.f32 %v164, 0.0
    %v207 = vmax.f32 %v169, 0.0
    %v208 = vmax.f32 %v172, 0.0
    %v209 = vmax.f32 %v177, 0.0
    %v210 = vmax.f32 %v180, 0.0
    %v211 = vmax.f32 %v185, 0.0
    %v212 = vmax.f32 %v188, 0.0
    %v213 = vmax.f32 %v193, 0.0
    %v214 = vmax.f32 %v196, 0.0
    %v215 = vpack.c.bf16 %v200, %v199
    %v216 = vpack.c.bf16 %v202, %v201
    %v217 = vpack.c.bf16 %v204, %v203
    %v218 = vpack.c.bf16 %v206, %v205
    %v219 = vpack.c.bf16 %v208, %v207
    %v220 = vpack.c.bf16 %v210, %v209
    %v221 = vpack.c.bf16 %v212, %v211
    %v222 = vpack.c.bf16 %v214, %v213
    %v223 = vld [vmem:[%s3] sm:$0xf]
    %v224 = vld [vmem:[%s3 + $0x4] sm:$0xf]
    %v225 = vld [vmem:[%s4] sm:$0xff]
    %v226 = vld [vmem:[%s4 + $0x8] sm:$0xff]
    %228 = vset.pattern.permute.xlu0 0
    %229 = vperm.xlu0 %228, %v225
    %v230 = vpop.permute.xlu0 %229
    %233 = vset.pattern.permute.xlu0 0
    %234 = vperm.xlu0 %233, %v226
    %v235 = vpop.permute.xlu0 %234
    %v239 = vunpack.c.l.b16 %v223
    %v240 = vunpack.c.l.b16 %v224
    %v241 = vpack.c.b16 %v240, %v239
    %v243 = vsel %vm77, %v241, 0
    %v246 = vsel %vm77, %v215, 0
    %v249 = vsel %vm77, %v216, 0
    %v252 = vsel %vm77, %v217, 0
    %v255 = vsel %vm77, %v218, 0
    %v258 = vsel %vm77, %v219, 0
    %v261 = vsel %vm77, %v220, 0
    %v264 = vsel %vm77, %v221, 0
    %v267 = vsel %vm77, %v222, 0
    %269 = vmatprep.subr.bf16.mxu0 0
    %270 = vmatpush1.bf16.xpose.msra.mxu0 %v246
    %271 = vmatprep.subr.bf16.mxu0 0
    %272 = vmatpush1.bf16.xpose.msra.mxu0 %v249
    %273 = vmatprep.subr.bf16.mxu0 0
    %274 = vmatpush1.bf16.xpose.msra.mxu0 %v252
    %275 = vmatprep.subr.bf16.mxu0 0
    %276 = vmatpush1.bf16.xpose.msra.mxu0 %v255
    %277 = vmatprep.subr.bf16.mxu0 0
    %278 = vmatpush1.bf16.xpose.msra.mxu0 %v258
    %279 = vmatprep.subr.bf16.mxu0 0
    %280 = vmatpush1.bf16.xpose.msra.mxu0 %v261
    %281 = vmatprep.subr.bf16.mxu0 0
    %282 = vmatpush1.bf16.xpose.msra.mxu0 %v264
    %283 = vmatprep.subr.bf16.mxu0 0
    %284 = vmatpush1.bf16.xpose.msra.mxu0 %v267
    %285 = vmatprep.subr.bf16.mxu0 0
    %286 = vmatpush1.bf16.xpose.msra.mxu0 0
    %287 = vmatprep.subr.bf16.mxu0 0
    %288 = vmatpush1.bf16.xpose.msra.mxu0 0
    %289 = vmatprep.subr.bf16.mxu0 0
    %290 = vmatpush1.bf16.xpose.msra.mxu0 0
    %291 = vmatprep.subr.bf16.mxu0 0
    %292 = vmatpush1.bf16.xpose.msra.mxu0 0
    %293 = vmatprep.subr.bf16.mxu0 0
    %294 = vmatpush1.bf16.xpose.msra.mxu0 0
    %295 = vmatprep.subr.bf16.mxu0 0
    %296 = vmatpush1.bf16.xpose.msra.mxu0 0
    %297 = vmatprep.subr.bf16.mxu0 0
    %298 = vmatpush1.bf16.xpose.msra.mxu0 0
    %299 = vmatprep.subr.bf16.mxu0 0
    %300 = vmatpush1.bf16.xpose.msra.mxu0 0
    %301 = vmatprep.mubr.bf16.mxu0 0
    %302 = vmatmul.mubr.bf16.gmra.mrb[0].mxu0 %v243
    %v303 = vpop.f32.mrb[0].mxu0
    %v304 = vadd.f32 %v230, %v303
    %v305 = vpop.f32.mrb[0].mxu0
    %v306 = vpop.f32.mrb[0].mxu0
    %v307 = vadd.f32 %v235, %v306
    %v308 = vpop.f32.mrb[0].mxu0
    %309 = vdwg.mxu0
    %v310 = vmax.f32 %v304, 0.0
    %v311 = vmax.f32 %v307, 0.0
    %v312 = vld [vmem:[%s5] sm:$0xff]
    %v313 = vld [vmem:[%s5 + $0x8] sm:$0xff]
    %315 = vset.pattern.permute.xlu0 0
    %316 = vperm.xlu0 %315, %v312
    %v317 = vpop.permute.xlu0 %316
    %320 = vset.pattern.permute.xlu0 0
    %321 = vperm.xlu0 %320, %v313
    %v322 = vpop.permute.xlu0 %321
    %v324 = vmul.f32 %v310, %v317
    %v325 = vmul.f32 %v311, %v322
    %v326 = vadd.f32 %v324, %v325
    %v327 = vrot.slane %v326, 4
    %v328 = vadd.f32 %v326, %v327
    %v329 = vrot.slane %v328, 2
    %v330 = vadd.f32 %v328, %v329
    %v331 = vrot.slane %v330, 1
    %v332 = vadd.f32 %v330, %v331
    %v333 = vld [vmem:[#allocation2] sm:$0x1]
    %335 = vset.pattern.permute.xlu0 0
    %336 = vperm.xlu0 %335, %v333
    %v337 = vpop.permute.xlu0 %336
    %v339 = vlaneseq
    %v340 = vshrl.u32 %v339, 7
    %v341 = vsub.s32 0, %v340
    %v342 = vrot.slane %v337, %v341
    %v343 = vadd.f32 %v332, %v342
    %344 = vst [vmem:[#allocation3] sm:$0x1] %v343
    // Predicated region
    $region30: #{tpu_custom_call.1} parent=1 // pred_check
      _
    $region31: #{tpu_custom_call.1} parent=1 // pred_check_branch
      %346 = sbr.rel (0) target = $region33
    $region32: #{tpu_custom_call.1} parent=1 // pred_region
      %s348 = ssub.s32 16, 16
      %349 = vsyncadd [#allocation4], %s348
      %s351 = sshll.u32 [#allocation3], 4
      %s352 = int_to_ptr.vmem [resolvable:$true] %s351
      %354 = dma.vmem_to_hbm [thread:$0]  %s352, 16, %s7, [#allocation4]
    $region33: #{tpu_custom_call.1} parent=1 // pred_fallthru
      _
    // Predicated region
    $region34: #{tpu_custom_call.1} parent=1 // pred_check
      _
    $region35: #{tpu_custom_call.1} parent=1 // pred_check_branch
      %356 = sbr.rel (0) target = $region37
    $region36: #{tpu_custom_call.1} parent=1 // pred_region
      %357 = dma.done [#allocation4], 16
    $region37: #{tpu_custom_call.1} parent=1 // pred_fallthru
      _
    %358 = vsyncpa [#allocation4], 1

</llo_original>
